<compile_context>
chip_gen: v5e
topology: v5e:2x2
jax: 0.10.0
libtpu: 0.0.40
codegen_flags: <defaults>
</compile_context>

<pallas_src>
import math

import jax
import jax.numpy as jnp
from jax.experimental import pallas as pl
from jax.experimental.pallas import tpu as pltpu

N_AGENTS = 128
N_TIMESTEPS = 4
DELTA_T = 1.0
EPS = 1e-10
LOG_EPS = math.log(EPS)


def _sir_kernel(const_ref, adj_t_ref, noise_ref, xtraj_ref, states_ref, x_scr):
    """One grid step = one SIR timestep. x_scr carries the state across steps."""
    t = pl.program_id(0)

    # Initialize the carried state from the constant slab on the first step.
    @pl.when(t == 0)
    def _():
        x_scr[...] = const_ref[0:3, :]

    inf = x_scr[0:1, :]                       # (1, N)
    sus = x_scr[1:2, :]
    rec = x_scr[2:3, :]
    deg_inv = const_ref[3:4, :]               # 1 / in-degree (0 for isolated nodes)
    gamma = const_ref[4:5, :]                 # broadcast scalars as lane vectors
    rho = const_ref[5:6, :]
    delta_t = const_ref[6:7, :]

    g = noise_ref[...]                        # (4, N) Gumbel(0,1) noise for this step

    # SIRMessagePassing (aggr='add'):
    #   n_infected_neighbors[i] = (1 - infected[i]) * sum_{j->i} infected[j]
    # Only the infected channel goes through the MXU ((1,N) @ (N,N)).
    prop_inf = jnp.dot(inf, adj_t_ref[...], preferred_element_type=jnp.float32)
    n_inf_nb = (1.0 - inf) * prop_inf

    lam = (sus + rho * rec) * n_inf_nb * deg_inv * delta_t

    # p_inf = clip(1 - exp(-lam), EPS, 1):
    #   log p_inf      = max(log1p(-exp(-lam)), log(EPS))
    #   log (1 - p_inf) = -lam                       (equal to reference up to O(EPS))
    log_p_inf = jnp.maximum(jnp.log1p(-jnp.exp(-lam)), LOG_EPS)
    log_q_inf = -lam

    p_rec = jnp.clip(gamma * inf, EPS, 1.0)
    log_p_rec = jnp.log(p_rec)
    log_q_rec = jnp.log1p(-p_rec)

    # Forward value of the hard Gumbel-softmax Bernoulli sample
    # (tau > 0 drops out of the argmax, so it does not appear here).
    new_inf = (log_p_inf + g[0:1, :] > log_q_inf + g[1:2, :]).astype(jnp.float32)
    new_rec = (log_p_rec + g[2:3, :] > log_q_rec + g[3:4, :]).astype(jnp.float32)

    inf_n = inf + new_inf - new_rec
    sus_n = sus - sus * new_inf
    rec_n = rec + new_rec - rec * new_inf

    # Direct row stores (no sublane concatenate); keep the carry + emit the step.
    x_scr[0:1, :] = inf_n
    x_scr[1:2, :] = sus_n
    x_scr[2:3, :] = rec_n
    xtraj_ref[...] = x_scr[...]

    # observe(): argmax over compartments, first-occurrence tie-break
    # (matches torch.argmax semantics), done with explicit compares.
    m01 = inf_n >= sus_n
    v01 = jnp.maximum(inf_n, sus_n)
    idx01 = jnp.where(m01, 0, 1)
    states_ref[...] = jnp.where(v01 >= rec_n, idx01, 2).astype(jnp.int32)


@jax.jit
def sir_run(const_slab, adj_t, noise):
    """Runs all timesteps inside a single pallas_call.

    const_slab: (8, N)  rows 0-2 initial x, row 3 = 1/deg, rows 4-6 = gamma, rho, dt
    adj_t:      (N, N)  A^T so that infected @ A^T sums incoming infected neighbors
    noise:      (T, 4, N) Gumbel(0,1) noise, 4 rows per step
    """
    n_steps = noise.shape[0]
    return pl.pallas_call(
        _sir_kernel,
        out_shape=(
            jax.ShapeDtypeStruct((n_steps, 3, N_AGENTS), jnp.float32),  # x per step
            jax.ShapeDtypeStruct((n_steps, 1, N_AGENTS), jnp.int32),    # argmax state
        ),
        grid_spec=pltpu.PrefetchScalarGridSpec(
            num_scalar_prefetch=0,
            grid=(n_steps,),
            in_specs=[
                # Constant index maps -> DMA'd once, resident in VMEM across steps.
                pl.BlockSpec((8, N_AGENTS), lambda t: (0, 0)),
                pl.BlockSpec((N_AGENTS, N_AGENTS), lambda t: (0, 0)),
                # Per-step noise slice.
                pl.BlockSpec((None, 4, N_AGENTS), lambda t: (t, 0, 0)),
            ],
            out_specs=(
                pl.BlockSpec((None, 3, N_AGENTS), lambda t: (t, 0, 0)),
                pl.BlockSpec((None, 1, N_AGENTS), lambda t: (t, 0, 0)),
            ),
            scratch_shapes=[pltpu.VMEM((3, N_AGENTS), jnp.float32)],
        ),
        compiler_params=pltpu.CompilerParams(
            dimension_semantics=("arbitrary",)),
    )(const_slab, adj_t, noise)


def sample_bernoulli_gs(key, probs):
    # Forward value of hard Gumbel-softmax Bernoulli sample (used for init).
    g = jax.random.gumbel(key, (2,) + probs.shape, dtype=jnp.float32)
    return (jnp.log(probs) + g[0] > jnp.log(1.0 - probs) + g[1]).astype(jnp.float32)


def sir_forward(params3, adj, key):
    """params3 = (gamma, rho, initial_fraction_infected); adj[i,j]=1 iff edge j->i."""
    gamma, rho, init_frac = params3[0], params3[1], params3[2]
    n = adj.shape[0]
    adj_t = adj.T                                   # for infected @ A^T
    deg = jnp.sum(adj, axis=1)                      # in-degree (aux message passing)
    deg_inv = jnp.where(deg > 0, 1.0 / jnp.maximum(deg, 1.0), 0.0)

    # initialize()
    key, k0 = jax.random.split(key)
    probs0 = init_frac * jnp.ones((n,), jnp.float32)
    new_infected = sample_bernoulli_gs(k0, probs0)
    x0 = jnp.stack([new_infected,
                    1.0 - new_infected,
                    jnp.zeros((n,), jnp.float32)], axis=0)    # (3, N)

    # Pack everything constant across timesteps into one (8, N) slab.
    const_slab = jnp.zeros((8, n), jnp.float32)
    const_slab = const_slab.at[0:3, :].set(x0)
    const_slab = const_slab.at[3, :].set(deg_inv)
    const_slab = const_slab.at[4, :].set(gamma)
    const_slab = const_slab.at[5, :].set(rho)
    const_slab = const_slab.at[6, :].set(jnp.float32(DELTA_T))

    key, kn = jax.random.split(key)
    noise = jax.random.gumbel(kn, (N_TIMESTEPS, 4, n), dtype=jnp.float32)

    x_traj, states_traj = sir_run(const_slab, adj_t, noise)
    states_traj = states_traj.reshape(N_TIMESTEPS, n)

    # observe(): per-compartment fractions from the lane-dense trajectory.
    frac = jnp.sum(x_traj, axis=2) / n                  # (T, 3)
    frac0 = jnp.sum(x0, axis=1) / n                     # (3,)
    states0 = jnp.argmax(x0, axis=0).astype(jnp.int32)  # (N,)
    # TODO(synk): torch_geometric RootedEgoNets(num_hops=1) is a graph-structural
    # subgraph-extraction transform with no Pallas compute equivalent; omitted.

    infected_per_day = jnp.concatenate([frac0[0:1], frac[:, 0]])
    susceptible_per_day = jnp.concatenate([frac0[1:2], frac[:, 1]])
    recovered_per_day = jnp.concatenate([frac0[2:3], frac[:, 2]])
    states_per_day = jnp.concatenate([states0[None, :], states_traj], axis=0)

    return susceptible_per_day, infected_per_day, recovered_per_day, states_per_day


if __name__ == "__main__":
    key = jax.random.PRNGKey(0)

    # Deterministic ring graph (every node has degree 2, symmetric adjacency,
    # equivalent to networkx.cycle_graph converted to bidirected PyG edges).
    idx = jnp.arange(N_AGENTS)
    adj = jnp.zeros((N_AGENTS, N_AGENTS), jnp.float32)
    adj = adj.at[idx, (idx + 1) % N_AGENTS].set(1.0)
    adj = adj.at[idx, (idx - 1) % N_AGENTS].set(1.0)

    # params = (gamma, rho, initial_fraction_infected)
    params3 = jnp.array([0.2, 0.05, 0.1], dtype=jnp.float32)

    out = jax.block_until_ready(sir_forward(params3, adj, key))
    susceptible_per_day, infected_per_day, recovered_per_day, states_per_day = out

    assert susceptible_per_day.shape == (N_TIMESTEPS + 1,)
    assert infected_per_day.shape == (N_TIMESTEPS + 1,)
    assert recovered_per_day.shape == (N_TIMESTEPS + 1,)
    assert states_per_day.shape == (N_TIMESTEPS + 1, N_AGENTS)
    assert bool(jnp.all(jnp.isfinite(susceptible_per_day)))
    assert bool(jnp.all(jnp.isfinite(infected_per_day)))
    assert bool(jnp.all(jnp.isfinite(recovered_per_day)))
    print("KERNEL_OK")
</pallas_src>

<mosaic_0001>
module attributes {stable_mosaic.version = 11 : i64} {
  func.func @_sir_kernel(%arg0: i32, %arg1: memref<8x128xf32, #tpu.memory_space<vmem>>, %arg2: memref<128x128xf32, #tpu.memory_space<vmem>>, %arg3: memref<1x4x128xf32, #tpu.memory_space<vmem>>, %arg4: memref<1x3x128xf32, #tpu.memory_space<vmem>>, %arg5: memref<1x1x128xi32, #tpu.memory_space<vmem>>, %arg6: memref<3x128xf32, #tpu.memory_space<vmem>>) attributes {dimension_semantics = [#tpu.dimension_semantics<arbitrary>], iteration_bounds = array<i64: 4>, scalar_prefetch = 0 : i64, scratch_operands = 1 : i64, tpu.core_type = #tpu.core_type<tc>, window_params = [{pipeline_mode = #tpu.pipeline_mode<synchronous>, transform_indices = @transform_0, window_bounds = array<i64: 8, 128>}, {pipeline_mode = #tpu.pipeline_mode<synchronous>, transform_indices = @transform_1, window_bounds = array<i64: 128, 128>}, {transform_indices = @transform_2, window_bounds = array<i64: 1, 4, 128>}, {transform_indices = @transform_3, window_bounds = array<i64: 1, 3, 128>}, {transform_indices = @transform_4, window_bounds = array<i64: 1, 1, 128>}]} {
    %c0_i32 = arith.constant 0 : i32
    %0 = arith.cmpi eq, %arg0, %c0_i32 : i32
    %1 = arith.extui %0 : i1 to i32
    %c0_i32_0 = arith.constant 0 : i32
    %2 = arith.cmpi ne, %1, %c0_i32_0 : i32
    scf.if %2 {
      %c0_36 = arith.constant 0 : index
      %c0_37 = arith.constant 0 : index
      %80 = vector.load %arg1[%c0_36, %c0_37] : memref<8x128xf32, #tpu.memory_space<vmem>>, vector<3x128xf32>
      %c0_38 = arith.constant 0 : index
      %c0_39 = arith.constant 0 : index
      %81 = vector.load %arg6[%c0_38, %c0_39] : memref<3x128xf32, #tpu.memory_space<vmem>>, vector<3x128xf32>
      tpu.vector_store %arg6[%c0_38, %c0_39], %80 {strides = array<i32>} : memref<3x128xf32, #tpu.memory_space<vmem>>, vector<3x128xf32>,
    } else {
    }
    %c0 = arith.constant 0 : index
    %c0_1 = arith.constant 0 : index
    %3 = vector.load %arg6[%c0, %c0_1] : memref<3x128xf32, #tpu.memory_space<vmem>>, vector<1x128xf32>
    %c1 = arith.constant 1 : index
    %c0_2 = arith.constant 0 : index
    %4 = vector.load %arg6[%c1, %c0_2] : memref<3x128xf32, #tpu.memory_space<vmem>>, vector<1x128xf32>
    %c2 = arith.constant 2 : index
    %c0_3 = arith.constant 0 : index
    %5 = vector.load %arg6[%c2, %c0_3] : memref<3x128xf32, #tpu.memory_space<vmem>>, vector<1x128xf32>
    %c3 = arith.constant 3 : index
    %c0_4 = arith.constant 0 : index
    %6 = vector.load %arg1[%c3, %c0_4] : memref<8x128xf32, #tpu.memory_space<vmem>>, vector<1x128xf32>
    %c4 = arith.constant 4 : index
    %c0_5 = arith.constant 0 : index
    %7 = vector.load %arg1[%c4, %c0_5] : memref<8x128xf32, #tpu.memory_space<vmem>>, vector<1x128xf32>
    %c5 = arith.constant 5 : index
    %c0_6 = arith.constant 0 : index
    %8 = vector.load %arg1[%c5, %c0_6] : memref<8x128xf32, #tpu.memory_space<vmem>>, vector<1x128xf32>
    %c6 = arith.constant 6 : index
    %c0_7 = arith.constant 0 : index
    %9 = vector.load %arg1[%c6, %c0_7] : memref<8x128xf32, #tpu.memory_space<vmem>>, vector<1x128xf32>
    %c0_8 = arith.constant 0 : index
    %c0_9 = arith.constant 0 : index
    %c0_10 = arith.constant 0 : index
    %10 = vector.load %arg3[%c0_8, %c0_9, %c0_10] : memref<1x4x128xf32, #tpu.memory_space<vmem>>, vector<1x4x128xf32>
    %11 = vector.shape_cast %10 : vector<1x4x128xf32> to vector<4x128xf32>
    %c0_11 = arith.constant 0 : index
    %c0_12 = arith.constant 0 : index
    %12 = vector.load %arg2[%c0_11, %c0_12] : memref<128x128xf32, #tpu.memory_space<vmem>>, vector<128x128xf32>
    %cst = arith.constant dense<0.000000e+00> : vector<1x128xf32>
    %13 = tpu.matmul %3, %12, %cst {dimension_numbers = #tpu.dot_dimension_numbers<[1], [0], [0], [1], [0, 0, 1, 1], [], []>} : vector<1x128xf32>, vector<128x128xf32>, vector<1x128xf32> -> vector<1x128xf32>
    %cst_13 = arith.constant 1.000000e+00 : f32
    %14 = vector.broadcast %cst_13 : f32 to vector<1x128xf32>
    %15 = arith.subf %14, %3 : vector<1x128xf32>
    %16 = arith.mulf %15, %13 : vector<1x128xf32>
    %17 = arith.mulf %8, %5 : vector<1x128xf32>
    %18 = arith.addf %4, %17 : vector<1x128xf32>
    %19 = arith.mulf %18, %16 : vector<1x128xf32>
    %20 = arith.mulf %19, %6 : vector<1x128xf32>
    %21 = arith.mulf %20, %9 : vector<1x128xf32>
    %cst_14 = arith.constant 0.000000e+00 : f32
    %22 = vector.broadcast %cst_14 : f32 to vector<1x128xf32>
    %23 = arith.subf %22, %21 : vector<1x128xf32>
    %24 = math.exp %23 : vector<1x128xf32>
    %cst_15 = arith.constant 0.000000e+00 : f32
    %25 = vector.broadcast %cst_15 : f32 to vector<1x128xf32>
    %26 = arith.subf %25, %24 : vector<1x128xf32>
    %27 = math.log1p %26 : vector<1x128xf32>
    %cst_16 = arith.constant -23.0258503 : f32
    %28 = vector.broadcast %cst_16 : f32 to vector<1x128xf32>
    %29 = arith.maximumf %27, %28 : vector<1x128xf32>
    %cst_17 = arith.constant 0.000000e+00 : f32
    %30 = vector.broadcast %cst_17 : f32 to vector<1x128xf32>
    %31 = arith.subf %30, %21 : vector<1x128xf32>
    %32 = arith.mulf %7, %3 : vector<1x128xf32>
    %cst_18 = arith.constant 1.000000e-10 : f32
    %cst_19 = arith.constant 1.000000e+00 : f32
    %33 = vector.broadcast %cst_18 : f32 to vector<1x128xf32>
    %34 = arith.maximumf %33, %32 : vector<1x128xf32>
    %35 = vector.broadcast %cst_19 : f32 to vector<1x128xf32>
    %36 = arith.minimumf %35, %34 : vector<1x128xf32>
    %37 = math.log %36 : vector<1x128xf32>
    %cst_20 = arith.constant 0.000000e+00 : f32
    %38 = vector.broadcast %cst_20 : f32 to vector<1x128xf32>
    %39 = arith.subf %38, %36 : vector<1x128xf32>
    %40 = math.log1p %39 : vector<1x128xf32>
    %41 = vector.extract_strided_slice %11 {offsets = [0, 0], sizes = [1, 128], strides = [1, 1]} : vector<4x128xf32> to vector<1x128xf32>
    %42 = arith.addf %29, %41 : vector<1x128xf32>
    %43 = vector.extract_strided_slice %11 {offsets = [1, 0], sizes = [1, 128], strides = [1, 1]} : vector<4x128xf32> to vector<1x128xf32>
    %44 = arith.addf %31, %43 : vector<1x128xf32>
    %45 = arith.cmpf ogt, %42, %44 : vector<1x128xf32>
    %46 = arith.extui %45 : vector<1x128xi1> to vector<1x128xi32>
    %47 = arith.sitofp %46 : vector<1x128xi32> to vector<1x128xf32>
    %48 = vector.extract_strided_slice %11 {offsets = [2, 0], sizes = [1, 128], strides = [1, 1]} : vector<4x128xf32> to vector<1x128xf32>
    %49 = arith.addf %37, %48 : vector<1x128xf32>
    %50 = vector.extract_strided_slice %11 {offsets = [3, 0], sizes = [1, 128], strides = [1, 1]} : vector<4x128xf32> to vector<1x128xf32>
    %51 = arith.addf %40, %50 : vector<1x128xf32>
    %52 = arith.cmpf ogt, %49, %51 : vector<1x128xf32>
    %53 = arith.extui %52 : vector<1x128xi1> to vector<1x128xi32>
    %54 = arith.sitofp %53 : vector<1x128xi32> to vector<1x128xf32>
    %55 = arith.addf %3, %47 : vector<1x128xf32>
    %56 = arith.subf %55, %54 : vector<1x128xf32>
    %57 = arith.mulf %4, %47 : vector<1x128xf32>
    %58 = arith.subf %4, %57 : vector<1x128xf32>
    %59 = arith.addf %5, %54 : vector<1x128xf32>
    %60 = arith.mulf %5, %47 : vector<1x128xf32>
    %61 = arith.subf %59, %60 : vector<1x128xf32>
    %c0_21 = arith.constant 0 : index
    %c0_22 = arith.constant 0 : index
    %62 = vector.load %arg6[%c0_21, %c0_22] : memref<3x128xf32, #tpu.memory_space<vmem>>, vector<1x128xf32>
    tpu.vector_store %arg6[%c0_21, %c0_22], %56 {strides = array<i32>} : memref<3x128xf32, #tpu.memory_space<vmem>>, vector<1x128xf32>,
    %c1_23 = arith.constant 1 : index
    %c0_24 = arith.constant 0 : index
    %63 = vector.load %arg6[%c1_23, %c0_24] : memref<3x128xf32, #tpu.memory_space<vmem>>, vector<1x128xf32>
    tpu.vector_store %arg6[%c1_23, %c0_24], %58 {strides = array<i32>} : memref<3x128xf32, #tpu.memory_space<vmem>>, vector<1x128xf32>,
    %c2_25 = arith.constant 2 : index
    %c0_26 = arith.constant 0 : index
    %64 = vector.load %arg6[%c2_25, %c0_26] : memref<3x128xf32, #tpu.memory_space<vmem>>, vector<1x128xf32>
    tpu.vector_store %arg6[%c2_25, %c0_26], %61 {strides = array<i32>} : memref<3x128xf32, #tpu.memory_space<vmem>>, vector<1x128xf32>,
    %c0_27 = arith.constant 0 : index
    %c0_28 = arith.constant 0 : index
    %65 = vector.load %arg6[%c0_27, %c0_28] : memref<3x128xf32, #tpu.memory_space<vmem>>, vector<3x128xf32>
    %c0_29 = arith.constant 0 : index
    %c0_30 = arith.constant 0 : index
    %c0_31 = arith.constant 0 : index
    %66 = vector.load %arg4[%c0_29, %c0_30, %c0_31] : memref<1x3x128xf32, #tpu.memory_space<vmem>>, vector<1x3x128xf32>
    %67 = vector.shape_cast %66 : vector<1x3x128xf32> to vector<3x128xf32>
    %68 = vector.shape_cast %65 : vector<3x128xf32> to vector<1x3x128xf32>
    tpu.vector_store %arg4[%c0_29, %c0_30, %c0_31], %68 {strides = array<i32>} : memref<1x3x128xf32, #tpu.memory_space<vmem>>, vector<1x3x128xf32>,
    %69 = arith.cmpf oge, %56, %58 : vector<1x128xf32>
    %70 = arith.maximumf %56, %58 : vector<1x128xf32>
    %c0_i32_32 = arith.constant 0 : i32
    %c1_i32 = arith.constant 1 : i32
    %71 = vector.broadcast %c0_i32_32 : i32 to vector<1x128xi32>
    %72 = vector.broadcast %c1_i32 : i32 to vector<1x128xi32>
    %73 = arith.select %69, %71, %72 : vector<1x128xi1>, vector<1x128xi32>
    %74 = arith.cmpf oge, %70, %61 : vector<1x128xf32>
    %c2_i32 = arith.constant 2 : i32
    %75 = vector.broadcast %c2_i32 : i32 to vector<1x128xi32>
    %76 = arith.select %74, %73, %75 : vector<1x128xi1>, vector<1x128xi32>
    %c0_33 = arith.constant 0 : index
    %c0_34 = arith.constant 0 : index
    %c0_35 = arith.constant 0 : index
    %77 = vector.load %arg5[%c0_33, %c0_34, %c0_35] : memref<1x1x128xi32, #tpu.memory_space<vmem>>, vector<1x1x128xi32>
    %78 = vector.shape_cast %77 : vector<1x1x128xi32> to vector<1x128xi32>
    %79 = vector.shape_cast %76 : vector<1x128xi32> to vector<1x1x128xi32>
    tpu.vector_store %arg5[%c0_33, %c0_34, %c0_35], %79 {strides = array<i32>} : memref<1x1x128xi32, #tpu.memory_space<vmem>>, vector<1x1x128xi32>,
    return
  }
  func.func @transform_0(%arg0: i32) -> (i32, i32) {
    %c0_i32 = arith.constant 0 : i32
    %c0_i32_0 = arith.constant 0 : i32
    %c0_i32_1 = arith.constant 0 : i32
    return %c0_i32, %c0_i32_0 : i32, i32
  }
  func.func @transform_1(%arg0: i32) -> (i32, i32) {
    %c0_i32 = arith.constant 0 : i32
    %c0_i32_0 = arith.constant 0 : i32
    %c0_i32_1 = arith.constant 0 : i32
    return %c0_i32, %c0_i32_0 : i32, i32
  }
  func.func @transform_2(%arg0: i32) -> (i32, i32, i32) {
    %c0_i32 = arith.constant 0 : i32
    %c0_i32_0 = arith.constant 0 : i32
    %c0_i32_1 = arith.constant 0 : i32
    return %arg0, %c0_i32, %c0_i32_0 : i32, i32, i32
  }
  func.func @transform_3(%arg0: i32) -> (i32, i32, i32) {
    %c0_i32 = arith.constant 0 : i32
    %c0_i32_0 = arith.constant 0 : i32
    %c0_i32_1 = arith.constant 0 : i32
    return %arg0, %c0_i32, %c0_i32_0 : i32, i32, i32
  }
  func.func @transform_4(%arg0: i32) -> (i32, i32, i32) {
    %c0_i32 = arith.constant 0 : i32
    %c0_i32_0 = arith.constant 0 : i32
    %c0_i32_1 = arith.constant 0 : i32
    return %arg0, %c0_i32, %c0_i32_0 : i32, i32, i32
  }
}

</mosaic_0001>

<llo_original>
// kernel: sir_run.1
$region0: #{sir_run.1}
  #allocation0 [shape = 'u32[]', space=smem, size = 0x4, offset = 0x4, fixed_abs, tag = 'smem constant byte address 0x4 - core index']
  #allocation1 [shape = 'u32[72,128]{1,0:T(1,128)}', space=vmem, size = 0x9000, scoped, tag = 'internal scratch']
  #allocation2 [shape = 'f32[3,128]{1,0:T(4,128)}', space=vmem, size = 0x800, scoped, tag = 'scratch operand']
  %s0 = inlined_call_operand.hbm [shape: f32[8,128], index: 0, kind: input, shape index: {}]
  %s1 = inlined_call_operand.hbm [shape: f32[128,128], index: 1, kind: input, shape index: {}]
  %s2 = inlined_call_operand.hbm [shape: f32[4,4,128], index: 2, kind: input, shape index: {}]
  %s3 = inlined_call_operand.vmem [shape: f32[4,3,128], index: 3, kind: output, shape index: {0}]
  %s4 = inlined_call_operand.hbm [shape: s32[4,1,128], index: 4, kind: output, shape index: {1}]
  %5 = xla_tuple %s3, %s4
  %s6 = sld [smem:[#allocation0]]
  $region69: #{sir_run.1} parent=0
    _
  %s8 = ssub.s32 1, %s6
  %s9 = scalar_select 0, %s8, %s6
  $region1: #{sir_run.1} parent=0
    #allocation3 [shape = 'u8[4096]{0}', space=vmem, size = 0x1000, scoped, tag = 'input window, operand 0, single buffered']
    #allocation4 [shape = 's32[2]{0}', space=sflag, size = 0x8, scoped, tag = 'scoped memory for sir_run.1']
    #allocation5 [shape = 's32[2]{0}', space=sflag, size = 0x8, scoped, tag = 'scoped memory for sir_run.1']
    #allocation6 [shape = 'u8[65536]{0}', space=vmem, size = 0x10000, scoped, tag = 'input window, operand 1, single buffered']
    #allocation7 [shape = 's32[1]{0}', space=sflag, size = 0x4, scoped, tag = 'scoped memory for sir_run.1']
    #allocation8 [shape = 'u8[4096]{0}', space=vmem, size = 0x1000, scoped, tag = 'input window, operand 2']
    #allocation9 [shape = 'u8[1024]{0}', space=vmem, size = 0x400, scoped, tag = 'output window, operand 1']
    %10 = vsyncpa [#allocation4], 0
    %11 = vsyncpa [#allocation7], 0
    %12 = vsyncpa [#allocation5], 0
    %s13 = scalar_lea.sflag [#allocation5], 1
    %14 = vsyncpa %s13, 0
    loop: start=0, step=1, limit=6
    $region2: #{sir_run.1} parent=1 // loop_pre_header
      _
    $region3: #{sir_run.1} parent=1 // loop_header
      %s16 = sphi 0, %s20
      %p17 = scmp.ge.s32.totalorder %s16, 6
      %s24 = sphi 0, %s24
      %s26 = sphi 0, %s24
      %s27 = sphi 0, %s26
      %s41 = sphi 0, %s27
      %s45 = sphi 0, %s45
      %s47 = sphi 0, %s45
      %s48 = sphi 0, %s47
      %s62 = sphi 0, %s48
      %s68 = sphi 0, %s70
      %s71 = sphi 0, %s68
      %s72 = sphi 0, %s71
      %s88 = sphi 0, %s72
      %s94 = sphi 0, %s96
      %s97 = sphi 0, %s94
      %s98 = sphi 0, %s97
      %s114 = sphi 0, %s98
      %s120 = sphi 0, %s122
      %s123 = sphi 0, %s120
      %s124 = sphi 0, %s123
      %s140 = sphi 0, %s124
    $region4: #{sir_run.1} parent=1 // loop_header_branch
      %19 = sbr.rel (%p17) target = $region8
    $region5: #{sir_run.1} parent=1 // loop_body
      %s21 = ssub.s32 %s16, 1
      %s22 = ssub.s32 %s16, 2
      %s23 = sadd.s32 %s16, 1
      %s25 = sadd.s32 %s24, 1
      %p28 = scmp.eq.s32.totalorder %s16, 3
      %p29 = scmp.ne.s32.totalorder %s24, %s26
      %p30 = scmp.eq.s32.totalorder %s16, 0
      %p31 = por %p29, %p30
      %p32 = scmp.ne.s32.totalorder %s24, %s26
      %p33 = scmp.eq.s32.totalorder %s21, 3
      %p34 = por %p32, %p33
      %p35 = scmp.ne.s32.totalorder %s26, %s27
      %p36 = scmp.eq.s32.totalorder %s21, 0
      %p37 = por %p35, %p36
      %p38 = scmp.ne.s32.totalorder %s26, %s27
      %p39 = scmp.eq.s32.totalorder %s22, 3
      %p40 = por %p38, %p39
      %p42 = scmp.ne.s32.totalorder %s27, %s41
      %p43 = scmp.eq.s32.totalorder %s22, 0
      %p44 = por %p42, %p43
      %s46 = sadd.s32 %s45, 1
      %p49 = scmp.eq.s32.totalorder %s16, 3
      %p50 = scmp.ne.s32.totalorder %s45, %s47
      %p51 = scmp.eq.s32.totalorder %s16, 0
      %p52 = por %p50, %p51
      %p53 = scmp.ne.s32.totalorder %s45, %s47
      %p54 = scmp.eq.s32.totalorder %s21, 3
      %p55 = por %p53, %p54
      %p56 = scmp.ne.s32.totalorder %s47, %s48
      %p57 = scmp.eq.s32.totalorder %s21, 0
      %p58 = por %p56, %p57
      %p59 = scmp.ne.s32.totalorder %s47, %s48
      %p60 = scmp.eq.s32.totalorder %s22, 3
      %p61 = por %p59, %p60
      %p63 = scmp.ne.s32.totalorder %s48, %s62
      %p64 = scmp.eq.s32.totalorder %s22, 0
      %p65 = por %p63, %p64
      %s66 = ssub.s32 %s16, %s23
      %p67 = scmp.eq.s32.totalorder %s66, 0
      %s69 = sadd.s32 %s68, 1
      %s70 = scalar_select %p67, %s68, %s69
      %p73 = pneg %p67
      %p74 = scmp.eq.s32.totalorder %s16, 3
      %p75 = por %p73, %p74
      %p76 = scmp.ne.s32.totalorder %s68, %s71
      %p77 = scmp.eq.s32.totalorder %s16, 0
      %p78 = por %p76, %p77
      %p79 = scmp.ne.s32.totalorder %s68, %s71
      %p80 = scmp.eq.s32.totalorder %s21, 3
      %p81 = por %p79, %p80
      %p82 = scmp.ne.s32.totalorder %s71, %s72
      %p83 = scmp.eq.s32.totalorder %s21, 0
      %p84 = por %p82, %p83
      %p85 = scmp.ne.s32.totalorder %s71, %s72
      %p86 = scmp.eq.s32.totalorder %s22, 3
      %p87 = por %p85, %p86
      %p89 = scmp.ne.s32.totalorder %s72, %s88
      %p90 = scmp.eq.s32.totalorder %s22, 0
      %p91 = por %p89, %p90
      %s92 = ssub.s32 %s16, %s23
      %p93 = scmp.eq.s32.totalorder %s92, 0
      %s95 = sadd.s32 %s94, 1
      %s96 = scalar_select %p93, %s94, %s95
      %p99 = pneg %p93
      %p100 = scmp.eq.s32.totalorder %s16, 3
      %p101 = por %p99, %p100
      %p102 = scmp.ne.s32.totalorder %s94, %s97
      %p103 = scmp.eq.s32.totalorder %s16, 0
      %p104 = por %p102, %p103
      %p105 = scmp.ne.s32.totalorder %s94, %s97
      %p106 = scmp.eq.s32.totalorder %s21, 3
      %p107 = por %p105, %p106
      %p108 = scmp.ne.s32.totalorder %s97, %s98
      %p109 = scmp.eq.s32.totalorder %s21, 0
      %p110 = por %p108, %p109
      %p111 = scmp.ne.s32.totalorder %s97, %s98
      %p112 = scmp.eq.s32.totalorder %s22, 3
      %p113 = por %p111, %p112
      %p115 = scmp.ne.s32.totalorder %s98, %s114
      %p116 = scmp.eq.s32.totalorder %s22, 0
      %p117 = por %p115, %p116
      %s118 = ssub.s32 %s16, %s23
      %p119 = scmp.eq.s32.totalorder %s118, 0
      %s121 = sadd.s32 %s120, 1
      %s122 = scalar_select %p119, %s120, %s121
      %p125 = pneg %p119
      %p126 = scmp.eq.s32.totalorder %s16, 3
      %p127 = por %p125, %p126
      %p128 = scmp.ne.s32.totalorder %s120, %s123
      %p129 = scmp.eq.s32.totalorder %s16, 0
      %p130 = por %p128, %p129
      %p131 = scmp.ne.s32.totalorder %s120, %s123
      %p132 = scmp.eq.s32.totalorder %s21, 3
      %p133 = por %p131, %p132
      %p134 = scmp.ne.s32.totalorder %s123, %s124
      %p135 = scmp.eq.s32.totalorder %s21, 0
      %p136 = por %p134, %p135
      %p137 = scmp.ne.s32.totalorder %s123, %s124
      %p138 = scmp.eq.s32.totalorder %s22, 3
      %p139 = por %p137, %p138
      %p141 = scmp.ne.s32.totalorder %s124, %s140
      %p142 = scmp.eq.s32.totalorder %s22, 0
      %p143 = por %p141, %p142
      %p144 = scmp.le.s32.totalorder 1, %s16
      %p145 = scmp.lt.s32.totalorder %s16, 5
      %p146 = pnand %p144, %p145
      %p147 = pneg %p146
      // Predicated region
      $region9: #{sir_run.1} parent=5 // pred_check
        _
      $region10: #{sir_run.1} parent=5 // pred_check_branch
        %149 = sbr.rel (%p146) target = $region12
      $region11: #{sir_run.1} parent=5 // pred_region
        %s150 = ssub.s32 %s16, 1
        // Predicated region
        $region13: #{sir_run.1} parent=11 // pred_check
          %p151 = pneg %p37
        $region14: #{sir_run.1} parent=11 // pred_check_branch
          %153 = sbr.rel (%p151) target = $region16
        $region15: #{sir_run.1} parent=11 // pred_region
          %155 = vsyncadd [#allocation4], 0
          %s157 = sshll.u32 %s0, 4
          %s158 = int_to_ptr.hbm [resolvable:$true] %s157
          %s159 = sshll.u32 [#allocation3], 4
          %s160 = int_to_ptr.vmem [resolvable:$true] %s159
          %162 = dma.hbm_to_vmem [thread:$0]  %s158, 128, %s160, [#allocation4]
        $region16: #{sir_run.1} parent=11 // pred_fallthru
          _
        // Predicated region
        $region17: #{sir_run.1} parent=11 // pred_check
          %p163 = pneg %p58
        $region18: #{sir_run.1} parent=11 // pred_check_branch
          %165 = sbr.rel (%p163) target = $region20
        $region19: #{sir_run.1} parent=11 // pred_region
          %167 = vsyncadd [#allocation7], 0
          %s168 = sshll.u32 %s1, 4
          %s169 = int_to_ptr.hbm [resolvable:$true] %s168
          %s170 = sshll.u32 [#allocation6], 4
          %s171 = int_to_ptr.vmem [resolvable:$true] %s170
          %176 = dma.hbm_to_vmem [thread:$0]  %s169, 2048, %s171, [#allocation7], 128, 128, 8
        $region20: #{sir_run.1} parent=11 // pred_fallthru
          _
      $region12: #{sir_run.1} parent=5 // pred_fallthru
        _
      %p177 = scmp.lt.s32.totalorder %s16, 4
      // Predicated region
      $region21: #{sir_run.1} parent=5 // pred_check
        %p178 = pneg %p177
      $region22: #{sir_run.1} parent=5 // pred_check_branch
        %180 = sbr.rel (%p178) target = $region24
      $region23: #{sir_run.1} parent=5 // pred_region
        // Predicated region
        $region25: #{sir_run.1} parent=23 // pred_check
          %p181 = pneg %p78
        $region26: #{sir_run.1} parent=23 // pred_check_branch
          %183 = sbr.rel (%p181) target = $region28
        $region27: #{sir_run.1} parent=23 // pred_region
          %s184 = sand.u32 %s16, 1
          %s185 = scalar_lea.sflag [#allocation4], %s184
          %s186 = sand.u32 %s68, 1
          %s187 = smul.addr %s186, 4
          %s188 = scalar_lea.vmem [#allocation8], %s187
          %190 = vsyncadd %s185, 0
          %s191 = smul.addr %s16, 4
          %s192 = scalar_lea.hbm %s2, %s191
          %s194 = sshll.u32 %s192, 4
          %s195 = int_to_ptr.hbm [resolvable:$true] %s194
          %s196 = sshll.u32 %s188, 4
          %s197 = int_to_ptr.vmem [resolvable:$true] %s196
          %199 = dma.hbm_to_vmem [thread:$0]  %s195, 64, %s197, %s185
        $region28: #{sir_run.1} parent=23 // pred_fallthru
          _
      $region24: #{sir_run.1} parent=5 // pred_fallthru
        _
      %p200 = scmp.le.s32.totalorder 1, %s16
      %p201 = scmp.lt.s32.totalorder %s16, 5
      %p202 = pnand %p200, %p201
      %p203 = pneg %p202
      // Predicated region
      $region29: #{sir_run.1} parent=5 // pred_check
        _
      $region30: #{sir_run.1} parent=5 // pred_check_branch
        %205 = sbr.rel (%p202) target = $region32
      $region31: #{sir_run.1} parent=5 // pred_region
        %s206 = ssub.s32 %s16, 1
        // Predicated region
        $region33: #{sir_run.1} parent=31 // pred_check
          %p207 = pneg %p37
        $region34: #{sir_run.1} parent=31 // pred_check_branch
          %209 = sbr.rel (%p207) target = $region36
        $region35: #{sir_run.1} parent=31 // pred_region
          %211 = dma.done [#allocation4], 128
        $region36: #{sir_run.1} parent=31 // pred_fallthru
          _
        // Predicated region
        $region37: #{sir_run.1} parent=31 // pred_check
          %p212 = pneg %p58
        $region38: #{sir_run.1} parent=31 // pred_check_branch
          %214 = sbr.rel (%p212) target = $region40
        $region39: #{sir_run.1} parent=31 // pred_region
          %216 = dma.done [#allocation7], 2048
        $region40: #{sir_run.1} parent=31 // pred_fallthru
          _
        %s217 = sand.u32 %s21, 1
        %s218 = scalar_lea.sflag [#allocation4], %s217
        %s219 = sand.u32 %s71, 1
        %s220 = smul.addr %s219, 4
        %s221 = scalar_lea.vmem [#allocation8], %s220
        // Predicated region
        $region41: #{sir_run.1} parent=31 // pred_check
          %p222 = pneg %p84
        $region42: #{sir_run.1} parent=31 // pred_check_branch
          %224 = sbr.rel (%p222) target = $region44
        $region43: #{sir_run.1} parent=31 // pred_region
          %226 = dma.done %s218, 64
        $region44: #{sir_run.1} parent=31 // pred_fallthru
          _
        %p227 = pneg %p37
        %p228 = pneg %p34
        %p229 = pneg %p58
        %p230 = pneg %p55
        %s231 = sand.u32 %s21, 1
        %s232 = scalar_lea.sflag [#allocation4], %s231
        %s233 = sand.u32 %s71, 1
        %s234 = smul.addr %s233, 4
        %s235 = scalar_lea.vmem [#allocation8], %s234
        %p236 = pneg %p84
        %p237 = pneg %p81
        %p238 = pneg %p110
        %p239 = pneg %p107
        %p240 = scmp.lt.s32.totalorder %s21, 3
        %s241 = scalar_select %p240, %s21, 3
        %s242 = smul.addr %s241, 4
        %s243 = scalar_lea.vmem %s3, %s242
        %p244 = pneg %p136
        %p245 = pneg %p133
        %s246 = sand.u32 %s123, 1
        %s247 = scalar_lea.sflag [#allocation5], %s246
        %s248 = sand.u32 %s123, 1
        %s249 = scalar_lea.vmem [#allocation9], %s248
        %p250 = scmp.lt.s32.totalorder %s21, 3
        %s251 = scalar_select %p250, %s21, 3
        %s252 = smul.addr %s251, 4
        %s253 = scalar_lea.vmem %s3, %s252
        %p254 = scmp.eq.s32.totalorder %s21, 0
        // Predicated region
        $region45: #{sir_run.1} parent=31 // pred_check
          %p255 = pneg %p254
        $region46: #{sir_run.1} parent=31 // pred_check_branch
          %257 = sbr.rel (%p255) target = $region48
        $region47: #{sir_run.1} parent=31 // pred_region
          %v258 = vld [vmem:[#allocation3] sm:$0x7]
          %259 = vst [vmem:[#allocation2] sm:$0x7] %v258
        $region48: #{sir_run.1} parent=31 // pred_fallthru
          _
        %v260 = vld [vmem:[#allocation2] sm:$0x1]
        %v261 = vld [vmem:[#allocation2 + $0x1] sm:$0x1]
        %v262 = vld [vmem:[#allocation2 + $0x2] sm:$0x1]
        %v263 = vld [vmem:[#allocation3 + $0x3] sm:$0x1]
        %v264 = vld [vmem:[#allocation3 + $0x4] sm:$0x1]
        %v265 = vld [vmem:[#allocation3 + $0x5] sm:$0x1]
        %v266 = vld [vmem:[#allocation3 + $0x6] sm:$0x1]
        %v267 = vld [vmem:[%s221] sm:$0xf]
        %v268 = vld [vmem:[#allocation6] sm:$0xff]
        %v269 = vld [vmem:[#allocation6 + $0x8] sm:$0xff]
        %v270 = vld [vmem:[#allocation6 + $0x10] sm:$0xff]
        %v271 = vld [vmem:[#allocation6 + $0x18] sm:$0xff]
        %v272 = vld [vmem:[#allocation6 + $0x20] sm:$0xff]
        %v273 = vld [vmem:[#allocation6 + $0x28] sm:$0xff]
        %v274 = vld [vmem:[#allocation6 + $0x30] sm:$0xff]
        %v275 = vld [vmem:[#allocation6 + $0x38] sm:$0xff]
        %v276 = vld [vmem:[#allocation6 + $0x40] sm:$0xff]
        %v277 = vld [vmem:[#allocation6 + $0x48] sm:$0xff]
        %v278 = vld [vmem:[#allocation6 + $0x50] sm:$0xff]
        %v279 = vld [vmem:[#allocation6 + $0x58] sm:$0xff]
        %v280 = vld [vmem:[#allocation6 + $0x60] sm:$0xff]
        %v281 = vld [vmem:[#allocation6 + $0x68] sm:$0xff]
        %v282 = vld [vmem:[#allocation6 + $0x70] sm:$0xff]
        %v283 = vld [vmem:[#allocation6 + $0x78] sm:$0xff]
        %284 = vmatpush.msra.mxu0 %v283
        %285 = vmatpush.msra.mxu0 %v282
        %286 = vmatpush.msra.mxu0 %v281
        %287 = vmatpush.msra.mxu0 %v280
        %288 = vmatpush.msra.mxu0 %v279
        %289 = vmatpush.msra.mxu0 %v278
        %290 = vmatpush.msra.mxu0 %v277
        %291 = vmatpush.msra.mxu0 %v276
        %292 = vmatpush.msra.mxu0 %v275
        %293 = vmatpush.msra.mxu0 %v274
        %294 = vmatpush.msra.mxu0 %v273
        %295 = vmatpush.msra.mxu0 %v272
        %296 = vmatpush.msra.mxu0 %v271
        %297 = vmatpush.msra.mxu0 %v270
        %298 = vmatpush.msra.mxu0 %v269
        %299 = vmatpush.msra.mxu0 %v268
        %300 = vmatmul.f32.gmra.mxu0 %v260
        %v301 = vpop.f32.mrf.mxu0
        %v302 = vadd.f32 0.0, %v301
        %303 = vdwg.mxu0
        %v304 = vsub.f32 1.0, %v260
        %v305 = vmul.f32 %v304, %v302
        %v306 = vmul.f32 %v265, %v262
        %v307 = vadd.f32 %v261, %v306
        %v308 = vmul.f32 %v307, %v305
        %v309 = vmul.f32 %v308, %v263
        %v310 = vmul.f32 %v309, %v266
        %v311 = vsub.f32 0.0, %v310
        %v312 = vmul.f32 %v311, 1.442695
        %v313 = vpow.pop %v312
        %v314 = vsub.f32 0.0, %v313
        %v315 = vadd.f32 %v314, 1.0
        %v316 = vlog2.pop %v315
        %v317 = vmul.f32 %v316, 0.6931472
        %v318 = vmul.f32 -0.5, %v314
        %v319 = vadd.f32 %v318, 1.0
        %v320 = vmul.f32 %v319, %v314
        %v321 = vand.u32 2147483647, %v314
        %vm322 = vcmp.lt.f32.partialorder %v321, 0.0004427343
        %v323 = vsel %vm322, %v320, %v317
        %v324 = vmax.f32 %v323, -23.02585
        %v325 = vmul.f32 %v264, %v260
        %v326 = vmax.f32 %v325, 1e-10
        %v327 = vmin.f32 %v326, 1.0
        %v328 = vlog2.pop %v327
        %v329 = vmul.f32 %v328, 0.6931472
        %v330 = vsub.f32 0.0, %v327
        %v331 = vadd.f32 %v330, 1.0
        %v332 = vlog2.pop %v331
        %v333 = vmul.f32 %v332, 0.6931472
        %v334 = vmul.f32 -0.5, %v330
        %v335 = vadd.f32 %v334, 1.0
        %v336 = vmul.f32 %v335, %v330
        %v337 = vand.u32 2147483647, %v330
        %vm338 = vcmp.lt.f32.partialorder %v337, 0.0004427343
        %v339 = vsel %vm338, %v336, %v333
        %v340 = vadd.f32 %v324, %v267
        %v342 = vrot.slane %v267, 1
        %v344 = vadd.f32 %v311, %v342
        %vm345 = vcmp.gt.f32.partialorder %v340, %v344
        %v346 = vsel %vm345, 1, 0
        %v347 = vcvt.s32.f32 %v346
        %v348 = vrot.slane %v267, 2
        %v350 = vadd.f32 %v329, %v348
        %v351 = vrot.slane %v267, 3
        %v353 = vadd.f32 %v339, %v351
        %vm354 = vcmp.gt.f32.partialorder %v350, %v353
        %v355 = vsel %vm354, 1, 0
        %v356 = vcvt.s32.f32 %v355
        %v357 = vadd.f32 %v260, %v347
        %v358 = vsub.f32 %v357, %v356
        %v359 = vmul.f32 %v261, %v347
        %v360 = vsub.f32 %v261, %v359
        %v361 = vadd.f32 %v262, %v356
        %v362 = vmul.f32 %v262, %v347
        %v363 = vsub.f32 %v361, %v362
        %364 = vst [vmem:[#allocation2] sm:$0x1] %v358
        %365 = vst [vmem:[#allocation2 + $0x1] sm:$0x1] %v360
        %366 = vst [vmem:[#allocation2 + $0x2] sm:$0x1] %v363
        %v367 = vld [vmem:[#allocation2] sm:$0x7]
        %368 = vst [vmem:[%s253] sm:$0x7] %v367
        %vm369 = vcmp.ge.f32.partialorder %v358, %v360
        %v370 = vmax.f32 %v358, %v360
        %v371 = vsel %vm369, 0, 1
        %vm372 = vcmp.ge.f32.partialorder %v370, %v363
        %v373 = vsel %vm372, %v371, 2
        %374 = vst [vmem:[%s249] sm:$0x1] %v373
        %p375 = scmp.lt.s32.totalorder %s21, 3
        %s376 = scalar_select %p375, %s21, 3
        %s377 = smul.addr %s376, 4
        %s378 = scalar_lea.vmem %s3, %s377
        %s379 = sand.u32 %s123, 1
        %s380 = scalar_lea.sflag [#allocation5], %s379
        %s381 = sand.u32 %s123, 1
        %s382 = scalar_lea.vmem [#allocation9], %s381
        // Predicated region
        $region49: #{sir_run.1} parent=31 // pred_check
          %p383 = pneg %p107
        $region50: #{sir_run.1} parent=31 // pred_check_branch
          %385 = sbr.rel (%p383) target = $region52
        $region51: #{sir_run.1} parent=31 // pred_region
          _
        $region52: #{sir_run.1} parent=31 // pred_fallthru
          _
        // Predicated region
        $region53: #{sir_run.1} parent=31 // pred_check
          %p386 = pneg %p133
        $region54: #{sir_run.1} parent=31 // pred_check_branch
          %388 = sbr.rel (%p386) target = $region56
        $region55: #{sir_run.1} parent=31 // pred_region
          %390 = vsyncadd %s380, 0
          %s391 = scalar_lea.hbm %s4, %s21
          %s393 = sshll.u32 %s382, 4
          %s394 = int_to_ptr.vmem [resolvable:$true] %s393
          %s395 = sshll.u32 %s391, 4
          %s396 = int_to_ptr.hbm [resolvable:$true] %s395
          %398 = dma.vmem_to_hbm [thread:$0]  %s394, 16, %s396, %s380
        $region56: #{sir_run.1} parent=31 // pred_fallthru
          _
      $region32: #{sir_run.1} parent=5 // pred_fallthru
        _
      %p399 = scmp.le.s32.totalorder 2, %s16
      // Predicated region
      $region57: #{sir_run.1} parent=5 // pred_check
        %p400 = pneg %p399
      $region58: #{sir_run.1} parent=5 // pred_check_branch
        %402 = sbr.rel (%p400) target = $region60
      $region59: #{sir_run.1} parent=5 // pred_region
        %s403 = ssub.s32 %s16, 2
        // Predicated region
        $region61: #{sir_run.1} parent=59 // pred_check
          %p404 = pneg %p113
        $region62: #{sir_run.1} parent=59 // pred_check_branch
          %406 = sbr.rel (%p404) target = $region64
        $region63: #{sir_run.1} parent=59 // pred_region
          %p407 = scmp.lt.s32.totalorder %s22, 3
          %s408 = scalar_select %p407, %s22, 3
          %s409 = smul.addr %s408, 4
          %s410 = scalar_lea.vmem %s3, %s409
        $region64: #{sir_run.1} parent=59 // pred_fallthru
          _
        // Predicated region
        $region65: #{sir_run.1} parent=59 // pred_check
          %p411 = pneg %p139
        $region66: #{sir_run.1} parent=59 // pred_check_branch
          %413 = sbr.rel (%p411) target = $region68
        $region67: #{sir_run.1} parent=59 // pred_region
          %s414 = sand.u32 %s124, 1
          %s415 = scalar_lea.sflag [#allocation5], %s414
          %s416 = sand.u32 %s124, 1
          %s417 = scalar_lea.vmem [#allocation9], %s416
          %419 = dma.done %s415, 16
        $region68: #{sir_run.1} parent=59 // pred_fallthru
          _
      $region60: #{sir_run.1} parent=5 // pred_fallthru
        _
    $region6: #{sir_run.1} parent=1 // loop_footer
      %s20 = sadd.s32 1, %s16
    $region7: #{sir_run.1} parent=1 // loop_footer_branch
      %15 = sbr.rel target = $region3
    $region8: #{sir_run.1} parent=1 // loop_exit
      _
    %420 = vsyncpa [#allocation4], 1
    %s421 = scalar_lea.sflag [#allocation4], 1
    %422 = vsyncpa %s421, 1
    %423 = vsyncpa [#allocation7], 1
    %424 = vsyncpa [#allocation5], 1
    %s425 = scalar_lea.sflag [#allocation5], 1
    %426 = vsyncpa %s425, 1

</llo_original>
